<compile_context>
chip_gen: v6e
topology: v6e:2x2x1
jax: 0.10.0
libtpu: 0.0.40
codegen_flags: <defaults>
</compile_context>

<pallas_src>
import jax
import jax.numpy as jnp
from jax.experimental import pallas as pl
from jax.experimental.pallas import tpu as pltpu


KH = KW = 3      # 3x3 stem conv (adapt_resnet_for_small_images)
KPAD = 32        # contraction dim padded 27 -> 32
CPAD = 128       # lane-padded head / logits width


def fused_stem_gap_head_kernel(p_ref, w_ref, beta_ref, wh_ref, bh_ref, o_ref):
    """One batch element: conv-as-matmul + BN beta + ReLU + GAP + head.

    p_ref   : (H*W, KPAD)   im2col patches (feature dim zero-padded 27 -> 32)
    w_ref   : (KPAD, Cout)  conv weights with BN gamma pre-folded (zero pad rows)
    beta_ref: (1, Cout)     BN beta
    wh_ref  : (Cout, CPAD)  head weights, 1/(H*W) GAP scale pre-folded, lane-padded
    bh_ref  : (1, CPAD)     head bias, lane-padded
    o_ref   : (1, CPAD)     padded logits for this batch element
    """
    # Single MXU matmul for the whole 3x3 conv of this image.
    conv = jnp.dot(p_ref[...], w_ref[...],
                   preferred_element_type=jnp.float32)        # (H*W, Cout)
    # BN affine (gamma already folded into w_ref) + ReLU.
    feat = jnp.maximum(conv + beta_ref[...], 0.0)             # (H*W, Cout)
    # Global average pool: sum here (XLU cross-sublane reduce); the 1/(H*W)
    # scale is folded into wh_ref.
    pooled = jnp.sum(feat, axis=0, keepdims=True)             # (1, Cout)
    o_ref[...] = jnp.dot(pooled, wh_ref[...],
                         preferred_element_type=jnp.float32) + bh_ref[...]


def _im2col(x_nchw):
    """NCHW -> (N*H*W, KPAD) patches; feature index = (dh*KW + dw)*Cin + c."""
    n, cin, h, w = x_nchw.shape
    x = jnp.transpose(x_nchw, (0, 2, 3, 1))                   # NHWC
    xp = jnp.pad(x, ((0, 0), (1, 1), (1, 1), (0, 0)))         # 1-px zero halo
    taps = [xp[:, dh:dh + h, dw:dw + w, :]
            for dh in range(KH) for dw in range(KW)]
    patches = jnp.concatenate(taps, axis=-1).reshape(n * h * w, KH * KW * cin)
    return jnp.pad(patches, ((0, 0), (0, KPAD - KH * KW * cin)))


def classification_network_forward(x_nchw, params, num_classes=10):
    """Forward pass of the (scaled-down) ClassificationNetwork."""
    n, cin, h, w = x_nchw.shape
    hw = h * w
    cout = params["conv_w"].shape[-1]

    patches = _im2col(x_nchw)                                  # (N*H*W, KPAD)

    out = pl.pallas_call(
        fused_stem_gap_head_kernel,
        out_shape=jax.ShapeDtypeStruct((n, 1, CPAD), jnp.float32),
        grid=(n,),
        in_specs=[
            pl.BlockSpec((hw, KPAD), lambda i: (i, 0)),        # this image's rows
            pl.BlockSpec((KPAD, cout), lambda i: (0, 0)),      # weights stay resident
            pl.BlockSpec((1, cout), lambda i: (0, 0)),
            pl.BlockSpec((cout, CPAD), lambda i: (0, 0)),
            pl.BlockSpec((1, CPAD), lambda i: (0, 0)),
        ],
        out_specs=pl.BlockSpec((None, 1, CPAD), lambda i: (i, 0, 0)),
        compiler_params=pltpu.CompilerParams(
            dimension_semantics=("parallel",)),  # batch over both TCs on v7x
    )(patches, params["conv_w"], params["bn_beta"],
      params["head_w"], params["head_b"])

    return out.reshape(n, CPAD)[:, :num_classes]


def init_params(key, cin=3, cout=64, num_classes=10, h=16, w=16):
    k1, k2, k3, k4, k5 = jax.random.split(key, 5)
    # Conv2d(3, 64, 3, stride=1, padding=1, bias=False): PyTorch (Cout, Cin, KH, KW)
    w_pt = jax.random.normal(k1, (cout, cin, KH, KW), jnp.float32) * jnp.sqrt(
        2.0 / (cin * KH * KW))
    # -> (KH*KW*Cin, Cout) with row index = (dh*KW + dw)*Cin + c (matches _im2col)
    conv_w = jnp.transpose(w_pt, (2, 3, 1, 0)).reshape(KH * KW * cin, cout)
    # BatchNorm2d affine (inference form).
    gamma = 1.0 + 0.1 * jax.random.normal(k2, (cout,), jnp.float32)
    beta = 0.1 * jax.random.normal(k3, (cout,), jnp.float32)
    # Fold gamma into the conv weights; zero-pad K 27 -> 32.
    conv_w_folded = jnp.pad(conv_w * gamma[None, :],
                            ((0, KPAD - KH * KW * cin), (0, 0)))
    # nn.Linear(embedding_dim, num_classes): PyTorch weight (num_classes, feat)
    bound = 1.0 / jnp.sqrt(cout)
    head_w_pt = jax.random.uniform(k4, (num_classes, cout), jnp.float32,
                                   -bound, bound)
    head_b_pt = jax.random.uniform(k5, (num_classes,), jnp.float32,
                                   -bound, bound)
    # Fold the 1/(H*W) GAP scale into the head weights; lane-pad out dim to 128.
    head_w = jnp.pad(head_w_pt.T / float(h * w),
                     ((0, 0), (0, CPAD - num_classes)))
    head_b = jnp.pad(head_b_pt, (0, CPAD - num_classes)).reshape(1, CPAD)
    return {
        "conv_w": conv_w_folded,            # (KPAD, Cout), gamma folded
        "bn_beta": beta.reshape(1, cout),   # (1, Cout)
        "head_w": head_w,                   # (Cout, 128), GAP scale folded
        "head_b": head_b,                   # (1, 128)
        # raw tensors kept only for the pure-JAX reference check
        "_w_pt": w_pt, "_gamma": gamma, "_beta": beta,
        "_head_w_pt": head_w_pt, "_head_b_pt": head_b_pt,
    }


def reference_forward(x_nchw, params):
    """Pure-JAX reference for correctness checking."""
    x = jnp.transpose(x_nchw, (0, 2, 3, 1))
    w_hwio = jnp.transpose(params["_w_pt"], (2, 3, 1, 0))      # (KH, KW, Cin, Cout)
    y = jax.lax.conv_general_dilated(
        x, w_hwio, window_strides=(1, 1), padding="SAME",
        dimension_numbers=("NHWC", "HWIO", "NHWC"))
    y = jnp.maximum(y * params["_gamma"] + params["_beta"], 0.0)
    pooled = jnp.mean(y, axis=(1, 2))                          # (N, Cout)
    return pooled @ params["_head_w_pt"].T + params["_head_b_pt"]


if __name__ == "__main__":
    key = jax.random.PRNGKey(0)
    k_x, k_p = jax.random.split(key)

    batch, cin, hw_size, num_classes = 2, 3, 16, 10            # small images
    x = jax.random.normal(k_x, (batch, cin, hw_size, hw_size), jnp.float32)

    params = init_params(k_p, cin=cin, cout=64, num_classes=num_classes,
                         h=hw_size, w=hw_size)

    logits = classification_network_forward(x, params, num_classes=num_classes)
    logits = jax.block_until_ready(logits)
    assert logits.shape == (batch, num_classes)

    ref = reference_forward(x, params)
    assert jnp.allclose(logits, ref, atol=1e-3, rtol=1e-3), (
        "Pallas kernel output mismatch vs reference")

    print("KERNEL_OK")
</pallas_src>

<mosaic_0001>
module attributes {stable_mosaic.version = 11 : i64} {
  func.func @fused_stem_gap_head_kernel(%arg0: i32, %arg1: memref<256x32xf32, #tpu.memory_space<vmem>>, %arg2: memref<32x64xf32, #tpu.memory_space<vmem>>, %arg3: memref<1x64xf32, #tpu.memory_space<vmem>>, %arg4: memref<64x128xf32, #tpu.memory_space<vmem>>, %arg5: memref<1x128xf32, #tpu.memory_space<vmem>>, %arg6: memref<1x1x128xf32, #tpu.memory_space<vmem>>) attributes {dimension_semantics = [#tpu.dimension_semantics<parallel>], iteration_bounds = array<i64: 2>, scalar_prefetch = 0 : i64, scratch_operands = 0 : i64, tpu.core_type = #tpu.core_type<tc>, window_params = [{transform_indices = @transform_0, window_bounds = array<i64: 256, 32>}, {pipeline_mode = #tpu.pipeline_mode<synchronous>, transform_indices = @transform_1, window_bounds = array<i64: 32, 64>}, {pipeline_mode = #tpu.pipeline_mode<synchronous>, transform_indices = @transform_2, window_bounds = array<i64: 1, 64>}, {pipeline_mode = #tpu.pipeline_mode<synchronous>, transform_indices = @transform_3, window_bounds = array<i64: 64, 128>}, {pipeline_mode = #tpu.pipeline_mode<synchronous>, transform_indices = @transform_4, window_bounds = array<i64: 1, 128>}, {transform_indices = @transform_5, window_bounds = array<i64: 1, 1, 128>}]} {
    %c0 = arith.constant 0 : index
    %c0_0 = arith.constant 0 : index
    %0 = vector.load %arg1[%c0, %c0_0] : memref<256x32xf32, #tpu.memory_space<vmem>>, vector<256x32xf32>
    %c0_1 = arith.constant 0 : index
    %c0_2 = arith.constant 0 : index
    %1 = vector.load %arg2[%c0_1, %c0_2] : memref<32x64xf32, #tpu.memory_space<vmem>>, vector<32x64xf32>
    %cst = arith.constant dense<0.000000e+00> : vector<256x64xf32>
    %2 = tpu.matmul %0, %1, %cst {dimension_numbers = #tpu.dot_dimension_numbers<[1], [0], [0], [1], [0, 0, 1, 1], [], []>} : vector<256x32xf32>, vector<32x64xf32>, vector<256x64xf32> -> vector<256x64xf32>
    %c0_3 = arith.constant 0 : index
    %c0_4 = arith.constant 0 : index
    %3 = vector.load %arg3[%c0_3, %c0_4] : memref<1x64xf32, #tpu.memory_space<vmem>>, vector<1x64xf32>
    %4 = vector.broadcast %3 : vector<1x64xf32> to vector<256x64xf32>
    %5 = arith.addf %2, %4 : vector<256x64xf32>
    %cst_5 = arith.constant 0.000000e+00 : f32
    %6 = vector.broadcast %cst_5 : f32 to vector<256x64xf32>
    %7 = arith.maximumf %5, %6 : vector<256x64xf32>
    %cst_6 = arith.constant dense<0.000000e+00> : vector<64xf32>
    %8 = vector.multi_reduction <add>, %7, %cst_6 [0] : vector<256x64xf32> to vector<64xf32>
    %9 = vector.shape_cast %8 : vector<64xf32> to vector<1x64xf32>
    %c0_7 = arith.constant 0 : index
    %c0_8 = arith.constant 0 : index
    %10 = vector.load %arg4[%c0_7, %c0_8] : memref<64x128xf32, #tpu.memory_space<vmem>>, vector<64x128xf32>
    %cst_9 = arith.constant dense<0.000000e+00> : vector<1x128xf32>
    %11 = tpu.matmul %9, %10, %cst_9 {dimension_numbers = #tpu.dot_dimension_numbers<[1], [0], [0], [1], [0, 0, 1, 1], [], []>} : vector<1x64xf32>, vector<64x128xf32>, vector<1x128xf32> -> vector<1x128xf32>
    %c0_10 = arith.constant 0 : index
    %c0_11 = arith.constant 0 : index
    %12 = vector.load %arg5[%c0_10, %c0_11] : memref<1x128xf32, #tpu.memory_space<vmem>>, vector<1x128xf32>
    %13 = arith.addf %11, %12 : vector<1x128xf32>
    %c0_12 = arith.constant 0 : index
    %c0_13 = arith.constant 0 : index
    %c0_14 = arith.constant 0 : index
    %14 = vector.load %arg6[%c0_12, %c0_13, %c0_14] : memref<1x1x128xf32, #tpu.memory_space<vmem>>, vector<1x1x128xf32>
    %15 = vector.shape_cast %14 : vector<1x1x128xf32> to vector<1x128xf32>
    %16 = vector.shape_cast %13 : vector<1x128xf32> to vector<1x1x128xf32>
    tpu.vector_store %arg6[%c0_12, %c0_13, %c0_14], %16 {strides = array<i32>} : memref<1x1x128xf32, #tpu.memory_space<vmem>>, vector<1x1x128xf32>,
    return
  }
  func.func @transform_0(%arg0: i32) -> (i32, i32) {
    %c0_i32 = arith.constant 0 : i32
    %c0_i32_0 = arith.constant 0 : i32
    return %arg0, %c0_i32 : i32, i32
  }
  func.func @transform_1(%arg0: i32) -> (i32, i32) {
    %c0_i32 = arith.constant 0 : i32
    %c0_i32_0 = arith.constant 0 : i32
    %c0_i32_1 = arith.constant 0 : i32
    return %c0_i32, %c0_i32_0 : i32, i32
  }
  func.func @transform_2(%arg0: i32) -> (i32, i32) {
    %c0_i32 = arith.constant 0 : i32
    %c0_i32_0 = arith.constant 0 : i32
    %c0_i32_1 = arith.constant 0 : i32
    return %c0_i32, %c0_i32_0 : i32, i32
  }
  func.func @transform_3(%arg0: i32) -> (i32, i32) {
    %c0_i32 = arith.constant 0 : i32
    %c0_i32_0 = arith.constant 0 : i32
    %c0_i32_1 = arith.constant 0 : i32
    return %c0_i32, %c0_i32_0 : i32, i32
  }
  func.func @transform_4(%arg0: i32) -> (i32, i32) {
    %c0_i32 = arith.constant 0 : i32
    %c0_i32_0 = arith.constant 0 : i32
    %c0_i32_1 = arith.constant 0 : i32
    return %c0_i32, %c0_i32_0 : i32, i32
  }
  func.func @transform_5(%arg0: i32) -> (i32, i32, i32) {
    %c0_i32 = arith.constant 0 : i32
    %c0_i32_0 = arith.constant 0 : i32
    %c0_i32_1 = arith.constant 0 : i32
    return %arg0, %c0_i32, %c0_i32_0 : i32, i32, i32
  }
}

</mosaic_0001>

<llo_original>
// kernel: tpu_custom_call.1
$region0: #{tpu_custom_call.1}
  #allocation0 [shape = 'u32[]', space=smem, size = 0x4, offset = 0x4, fixed_abs, tag = 'smem constant byte address 0x4 - core index']
  #allocation1 [shape = 'u32[144,128]{1,0:T(1,128)}', space=vmem, size = 0x12000, scoped, tag = 'internal scratch']
  %s0 = inlined_call_operand.vmem [shape: f32[512,32], index: 0, kind: input, shape index: {}]
  %s1 = inlined_call_operand.vmem [shape: f32[32,64], index: 1, kind: input, shape index: {}]
  %s2 = inlined_call_operand.vmem [shape: f32[1,64], index: 2, kind: input, shape index: {}]
  %s3 = inlined_call_operand.vmem [shape: f32[64,128], index: 3, kind: input, shape index: {}]
  %s4 = inlined_call_operand.vmem [shape: f32[1,128], index: 4, kind: input, shape index: {}]
  %s5 = inlined_call_operand.hbm [shape: f32[2,1,128], index: 5, kind: output, shape index: {}]
  %s6 = sld [smem:[#allocation0]]
  $region53: #{tpu_custom_call.1} parent=0
    _
  %s8 = ssub.s32 1, %s6
  %s9 = scalar_select 0, %s8, %s6
  $region1: #{tpu_custom_call.1} parent=0
    #allocation2 [shape = 'u8[1024]{0}', space=vmem, size = 0x400, scoped, tag = 'output window, operand 0']
    #allocation3 [shape = 's32[2]{0}', space=sflag, size = 0x8, scoped, tag = 'scoped memory for tpu_custom_call.1']
    %10 = vsyncpa [#allocation3], 0
    %s11 = scalar_lea.sflag [#allocation3], 1
    %12 = vsyncpa %s11, 0
    loop: start=0, step=1, limit=4
    $region2: #{tpu_custom_call.1} parent=1 // loop_pre_header
      _
    $region3: #{tpu_custom_call.1} parent=1 // loop_header
      %s14 = sphi 0, %s18
      %p15 = scmp.ge.s32.totalorder %s14, 4
      %s24 = sphi 0, %s26
      %s27 = sphi 0, %s24
      %s28 = sphi 0, %s27
      %s44 = sphi 0, %s28
      %s48 = sphi 0, %s48
      %s50 = sphi 0, %s48
      %s51 = sphi 0, %s50
      %s65 = sphi 0, %s51
      %s69 = sphi 0, %s69
      %s71 = sphi 0, %s69
      %s72 = sphi 0, %s71
      %s86 = sphi 0, %s72
      %s90 = sphi 0, %s90
      %s92 = sphi 0, %s90
      %s93 = sphi 0, %s92
      %s107 = sphi 0, %s93
      %s111 = sphi 0, %s111
      %s113 = sphi 0, %s111
      %s114 = sphi 0, %s113
      %s128 = sphi 0, %s114
      %s134 = sphi 0, %s136
      %s137 = sphi 0, %s134
      %s138 = sphi 0, %s137
      %s154 = sphi 0, %s138
    $region4: #{tpu_custom_call.1} parent=1 // loop_header_branch
      %17 = sbr.rel (%p15) target = $region8
    $region5: #{tpu_custom_call.1} parent=1 // loop_body
      %s19 = ssub.s32 %s14, 1
      %s20 = ssub.s32 %s14, 2
      %s21 = sadd.s32 %s14, 1
      %s22 = ssub.s32 %s14, %s21
      %p23 = scmp.eq.s32.totalorder %s22, 0
      %s25 = sadd.s32 %s24, 1
      %s26 = scalar_select %p23, %s24, %s25
      %p29 = pneg %p23
      %p30 = scmp.eq.s32.totalorder %s14, 1
      %p31 = por %p29, %p30
      %p32 = scmp.ne.s32.totalorder %s24, %s27
      %p33 = scmp.eq.s32.totalorder %s14, 0
      %p34 = por %p32, %p33
      %p35 = scmp.ne.s32.totalorder %s24, %s27
      %p36 = scmp.eq.s32.totalorder %s19, 1
      %p37 = por %p35, %p36
      %p38 = scmp.ne.s32.totalorder %s27, %s28
      %p39 = scmp.eq.s32.totalorder %s19, 0
      %p40 = por %p38, %p39
      %p41 = scmp.ne.s32.totalorder %s27, %s28
      %p42 = scmp.eq.s32.totalorder %s20, 1
      %p43 = por %p41, %p42
      %p45 = scmp.ne.s32.totalorder %s28, %s44
      %p46 = scmp.eq.s32.totalorder %s20, 0
      %p47 = por %p45, %p46
      %s49 = sadd.s32 %s48, 1
      %p52 = scmp.eq.s32.totalorder %s14, 1
      %p53 = scmp.ne.s32.totalorder %s48, %s50
      %p54 = scmp.eq.s32.totalorder %s14, 0
      %p55 = por %p53, %p54
      %p56 = scmp.ne.s32.totalorder %s48, %s50
      %p57 = scmp.eq.s32.totalorder %s19, 1
      %p58 = por %p56, %p57
      %p59 = scmp.ne.s32.totalorder %s50, %s51
      %p60 = scmp.eq.s32.totalorder %s19, 0
      %p61 = por %p59, %p60
      %p62 = scmp.ne.s32.totalorder %s50, %s51
      %p63 = scmp.eq.s32.totalorder %s20, 1
      %p64 = por %p62, %p63
      %p66 = scmp.ne.s32.totalorder %s51, %s65
      %p67 = scmp.eq.s32.totalorder %s20, 0
      %p68 = por %p66, %p67
      %s70 = sadd.s32 %s69, 1
      %p73 = scmp.eq.s32.totalorder %s14, 1
      %p74 = scmp.ne.s32.totalorder %s69, %s71
      %p75 = scmp.eq.s32.totalorder %s14, 0
      %p76 = por %p74, %p75
      %p77 = scmp.ne.s32.totalorder %s69, %s71
      %p78 = scmp.eq.s32.totalorder %s19, 1
      %p79 = por %p77, %p78
      %p80 = scmp.ne.s32.totalorder %s71, %s72
      %p81 = scmp.eq.s32.totalorder %s19, 0
      %p82 = por %p80, %p81
      %p83 = scmp.ne.s32.totalorder %s71, %s72
      %p84 = scmp.eq.s32.totalorder %s20, 1
      %p85 = por %p83, %p84
      %p87 = scmp.ne.s32.totalorder %s72, %s86
      %p88 = scmp.eq.s32.totalorder %s20, 0
      %p89 = por %p87, %p88
      %s91 = sadd.s32 %s90, 1
      %p94 = scmp.eq.s32.totalorder %s14, 1
      %p95 = scmp.ne.s32.totalorder %s90, %s92
      %p96 = scmp.eq.s32.totalorder %s14, 0
      %p97 = por %p95, %p96
      %p98 = scmp.ne.s32.totalorder %s90, %s92
      %p99 = scmp.eq.s32.totalorder %s19, 1
      %p100 = por %p98, %p99
      %p101 = scmp.ne.s32.totalorder %s92, %s93
      %p102 = scmp.eq.s32.totalorder %s19, 0
      %p103 = por %p101, %p102
      %p104 = scmp.ne.s32.totalorder %s92, %s93
      %p105 = scmp.eq.s32.totalorder %s20, 1
      %p106 = por %p104, %p105
      %p108 = scmp.ne.s32.totalorder %s93, %s107
      %p109 = scmp.eq.s32.totalorder %s20, 0
      %p110 = por %p108, %p109
      %s112 = sadd.s32 %s111, 1
      %p115 = scmp.eq.s32.totalorder %s14, 1
      %p116 = scmp.ne.s32.totalorder %s111, %s113
      %p117 = scmp.eq.s32.totalorder %s14, 0
      %p118 = por %p116, %p117
      %p119 = scmp.ne.s32.totalorder %s111, %s113
      %p120 = scmp.eq.s32.totalorder %s19, 1
      %p121 = por %p119, %p120
      %p122 = scmp.ne.s32.totalorder %s113, %s114
      %p123 = scmp.eq.s32.totalorder %s19, 0
      %p124 = por %p122, %p123
      %p125 = scmp.ne.s32.totalorder %s113, %s114
      %p126 = scmp.eq.s32.totalorder %s20, 1
      %p127 = por %p125, %p126
      %p129 = scmp.ne.s32.totalorder %s114, %s128
      %p130 = scmp.eq.s32.totalorder %s20, 0
      %p131 = por %p129, %p130
      %s132 = ssub.s32 %s14, %s21
      %p133 = scmp.eq.s32.totalorder %s132, 0
      %s135 = sadd.s32 %s134, 1
      %s136 = scalar_select %p133, %s134, %s135
      %p139 = pneg %p133
      %p140 = scmp.eq.s32.totalorder %s14, 1
      %p141 = por %p139, %p140
      %p142 = scmp.ne.s32.totalorder %s134, %s137
      %p143 = scmp.eq.s32.totalorder %s14, 0
      %p144 = por %p142, %p143
      %p145 = scmp.ne.s32.totalorder %s134, %s137
      %p146 = scmp.eq.s32.totalorder %s19, 1
      %p147 = por %p145, %p146
      %p148 = scmp.ne.s32.totalorder %s137, %s138
      %p149 = scmp.eq.s32.totalorder %s19, 0
      %p150 = por %p148, %p149
      %p151 = scmp.ne.s32.totalorder %s137, %s138
      %p152 = scmp.eq.s32.totalorder %s20, 1
      %p153 = por %p151, %p152
      %p155 = scmp.ne.s32.totalorder %s138, %s154
      %p156 = scmp.eq.s32.totalorder %s20, 0
      %p157 = por %p155, %p156
      %p158 = scmp.le.s32.totalorder 1, %s14
      %p159 = scmp.lt.s32.totalorder %s14, 3
      %p160 = pnand %p158, %p159
      %p161 = pneg %p160
      // Predicated region
      $region9: #{tpu_custom_call.1} parent=5 // pred_check
        _
      $region10: #{tpu_custom_call.1} parent=5 // pred_check_branch
        %163 = sbr.rel (%p160) target = $region12
      $region11: #{tpu_custom_call.1} parent=5 // pred_region
        %s164 = ssub.s32 %s14, 1
        // Predicated region
        $region13: #{tpu_custom_call.1} parent=11 // pred_check
          %p165 = pneg %p61
        $region14: #{tpu_custom_call.1} parent=11 // pred_check_branch
          %167 = sbr.rel (%p165) target = $region16
        $region15: #{tpu_custom_call.1} parent=11 // pred_region
          _
        $region16: #{tpu_custom_call.1} parent=11 // pred_fallthru
          _
        // Predicated region
        $region17: #{tpu_custom_call.1} parent=11 // pred_check
          %p168 = pneg %p82
        $region18: #{tpu_custom_call.1} parent=11 // pred_check_branch
          %170 = sbr.rel (%p168) target = $region20
        $region19: #{tpu_custom_call.1} parent=11 // pred_region
          _
        $region20: #{tpu_custom_call.1} parent=11 // pred_fallthru
          _
        // Predicated region
        $region21: #{tpu_custom_call.1} parent=11 // pred_check
          %p171 = pneg %p103
        $region22: #{tpu_custom_call.1} parent=11 // pred_check_branch
          %173 = sbr.rel (%p171) target = $region24
        $region23: #{tpu_custom_call.1} parent=11 // pred_region
          _
        $region24: #{tpu_custom_call.1} parent=11 // pred_fallthru
          _
        // Predicated region
        $region25: #{tpu_custom_call.1} parent=11 // pred_check
          %p174 = pneg %p124
        $region26: #{tpu_custom_call.1} parent=11 // pred_check_branch
          %176 = sbr.rel (%p174) target = $region28
        $region27: #{tpu_custom_call.1} parent=11 // pred_region
          _
        $region28: #{tpu_custom_call.1} parent=11 // pred_fallthru
          _
      $region12: #{tpu_custom_call.1} parent=5 // pred_fallthru
        _
      %p177 = scmp.lt.s32.totalorder %s14, 2
      // Predicated region
      $region29: #{tpu_custom_call.1} parent=5 // pred_check
        %p178 = pneg %p177
      $region30: #{tpu_custom_call.1} parent=5 // pred_check_branch
        %180 = sbr.rel (%p178) target = $region32
      $region31: #{tpu_custom_call.1} parent=5 // pred_region
        // Predicated region
        $region33: #{tpu_custom_call.1} parent=31 // pred_check
          %p181 = pneg %p34
        $region34: #{tpu_custom_call.1} parent=31 // pred_check_branch
          %183 = sbr.rel (%p181) target = $region36
        $region35: #{tpu_custom_call.1} parent=31 // pred_region
          %s184 = smul.u32 32, %s14
          %p185 = scmp.lt.s32.totalorder %s184, 63
          %s186 = scalar_select %p185, %s184, 63
          %s187 = smul.addr %s186, 8
          %s188 = scalar_lea.vmem %s0, %s187
          %s189 = smul.u32 32, %s14
        $region36: #{tpu_custom_call.1} parent=31 // pred_fallthru
          _
      $region32: #{tpu_custom_call.1} parent=5 // pred_fallthru
        _
      %p190 = scmp.le.s32.totalorder 1, %s14
      %p191 = scmp.lt.s32.totalorder %s14, 3
      %p192 = pnand %p190, %p191
      %p193 = pneg %p192
      // Predicated region
      $region37: #{tpu_custom_call.1} parent=5 // pred_check
        _
      $region38: #{tpu_custom_call.1} parent=5 // pred_check_branch
        %195 = sbr.rel (%p192) target = $region40
      $region39: #{tpu_custom_call.1} parent=5 // pred_region
        %s196 = ssub.s32 %s14, 1
        %s197 = smul.u32 32, %s19
        %p198 = scmp.lt.s32.totalorder %s197, 63
        %s199 = scalar_select %p198, %s197, 63
        %s200 = smul.addr %s199, 8
        %s201 = scalar_lea.vmem %s0, %s200
        %p202 = pneg %p40
        %p203 = pneg %p37
        %p204 = pneg %p61
        %p205 = pneg %p58
        %p206 = pneg %p82
        %p207 = pneg %p79
        %p208 = pneg %p103
        %p209 = pneg %p100
        %p210 = pneg %p124
        %p211 = pneg %p121
        %p212 = pneg %p150
        %p213 = pneg %p147
        %s214 = sand.u32 %s137, 1
        %s215 = scalar_lea.sflag [#allocation3], %s214
        %s216 = sand.u32 %s137, 1
        %s217 = scalar_lea.vmem [#allocation2], %s216
        %s218 = smul.u32 32, %s19
        %p219 = scmp.lt.s32.totalorder %s218, 63
        %s220 = scalar_select %p219, %s218, 63
        %s221 = smul.addr %s220, 8
        %s222 = scalar_lea.vmem %s0, %s221
        %s223 = smul.u32 32, %s19
        %v224 = vld [vmem:[%s222] sm:$0xff]
        %v225 = vld [vmem:[%s222 + $0x8] sm:$0xff]
        %v226 = vld [vmem:[%s222 + $0x10] sm:$0xff]
        %v227 = vld [vmem:[%s222 + $0x18] sm:$0xff]
        %v228 = vld [vmem:[%s222 + $0x20] sm:$0xff]
        %v229 = vld [vmem:[%s222 + $0x28] sm:$0xff]
        %v230 = vld [vmem:[%s222 + $0x30] sm:$0xff]
        %v231 = vld [vmem:[%s222 + $0x38] sm:$0xff]
        %v232 = vld [vmem:[%s222 + $0x40] sm:$0xff]
        %v233 = vld [vmem:[%s222 + $0x48] sm:$0xff]
        %v234 = vld [vmem:[%s222 + $0x50] sm:$0xff]
        %v235 = vld [vmem:[%s222 + $0x58] sm:$0xff]
        %v236 = vld [vmem:[%s222 + $0x60] sm:$0xff]
        %v237 = vld [vmem:[%s222 + $0x68] sm:$0xff]
        %v238 = vld [vmem:[%s222 + $0x70] sm:$0xff]
        %v239 = vld [vmem:[%s222 + $0x78] sm:$0xff]
        %v240 = vld [vmem:[%s222 + $0x80] sm:$0xff]
        %v241 = vld [vmem:[%s222 + $0x88] sm:$0xff]
        %v242 = vld [vmem:[%s222 + $0x90] sm:$0xff]
        %v243 = vld [vmem:[%s222 + $0x98] sm:$0xff]
        %v244 = vld [vmem:[%s222 + $0xa0] sm:$0xff]
        %v245 = vld [vmem:[%s222 + $0xa8] sm:$0xff]
        %v246 = vld [vmem:[%s222 + $0xb0] sm:$0xff]
        %v247 = vld [vmem:[%s222 + $0xb8] sm:$0xff]
        %v248 = vld [vmem:[%s222 + $0xc0] sm:$0xff]
        %v249 = vld [vmem:[%s222 + $0xc8] sm:$0xff]
        %v250 = vld [vmem:[%s222 + $0xd0] sm:$0xff]
        %v251 = vld [vmem:[%s222 + $0xd8] sm:$0xff]
        %v252 = vld [vmem:[%s222 + $0xe0] sm:$0xff]
        %v253 = vld [vmem:[%s222 + $0xe8] sm:$0xff]
        %v254 = vld [vmem:[%s222 + $0xf0] sm:$0xff]
        %v255 = vld [vmem:[%s222 + $0xf8] sm:$0xff]
        %v256 = vld [vmem:[%s1] sm:$0xff]
        %v257 = vld [vmem:[%s1 + $0x8] sm:$0xff]
        %v258 = vld [vmem:[%s1 + $0x10] sm:$0xff]
        %v259 = vld [vmem:[%s1 + $0x18] sm:$0xff]
        %v260 = vld [vmem:[%s2] sm:$0x1]
        %v262 = vlaneseq
        %v263 = vshrl.u32 %v262, 7
        %v264 = vsub.s32 0, %v263
        %v265 = vrot.slane %v260, %v264
        %vm267 = vcmask 261120
        %v269 = vsel %vm267, %v224, 0
        %v272 = vsel %vm267, %v225, 0
        %v275 = vsel %vm267, %v226, 0
        %v278 = vsel %vm267, %v227, 0
        %v281 = vsel %vm267, %v228, 0
        %v284 = vsel %vm267, %v229, 0
        %v287 = vsel %vm267, %v230, 0
        %v290 = vsel %vm267, %v231, 0
        %v293 = vsel %vm267, %v232, 0
        %v296 = vsel %vm267, %v233, 0
        %v299 = vsel %vm267, %v234, 0
        %v302 = vsel %vm267, %v235, 0
        %v305 = vsel %vm267, %v236, 0
        %v308 = vsel %vm267, %v237, 0
        %v311 = vsel %vm267, %v238, 0
        %v314 = vsel %vm267, %v239, 0
        %v317 = vsel %vm267, %v240, 0
        %v320 = vsel %vm267, %v241, 0
        %v323 = vsel %vm267, %v242, 0
        %v326 = vsel %vm267, %v243, 0
        %v329 = vsel %vm267, %v244, 0
        %v332 = vsel %vm267, %v245, 0
        %v335 = vsel %vm267, %v246, 0
        %v338 = vsel %vm267, %v247, 0
        %v341 = vsel %vm267, %v248, 0
        %v344 = vsel %vm267, %v249, 0
        %v347 = vsel %vm267, %v250, 0
        %v350 = vsel %vm267, %v251, 0
        %v353 = vsel %vm267, %v252, 0
        %v356 = vsel %vm267, %v253, 0
        %v359 = vsel %vm267, %v254, 0
        %v362 = vsel %vm267, %v255, 0
        %364 = vmatprep.subr.mxu0 0.0
        %365 = vmatpush1.msra.mxu0 0.0
        %366 = vmatprep.subr.mxu0 0.0
        %367 = vmatpush1.msra.mxu0 0.0
        %368 = vmatprep.subr.mxu0 0.0
        %369 = vmatpush1.msra.mxu0 0.0
        %370 = vmatprep.subr.mxu0 0.0
        %371 = vmatpush1.msra.mxu0 0.0
        %372 = vmatprep.subr.mxu0 0.0
        %373 = vmatpush1.msra.mxu0 0.0
        %374 = vmatprep.subr.mxu0 0.0
        %375 = vmatpush1.msra.mxu0 0.0
        %376 = vmatprep.subr.mxu0 0.0
        %377 = vmatpush1.msra.mxu0 0.0
        %378 = vmatprep.subr.mxu0 0.0
        %379 = vmatpush1.msra.mxu0 0.0
        %380 = vmatprep.subr.mxu0 0.0
        %381 = vmatpush1.msra.mxu0 0.0
        %382 = vmatprep.subr.mxu0 0.0
        %383 = vmatpush1.msra.mxu0 0.0
        %384 = vmatprep.subr.mxu0 0.0
        %385 = vmatpush1.msra.mxu0 0.0
        %386 = vmatprep.subr.mxu0 0.0
        %387 = vmatpush1.msra.mxu0 0.0
        %388 = vmatprep.subr.mxu0 0.0
        %389 = vmatpush1.msra.mxu0 %v259
        %390 = vmatprep.subr.mxu0 0.0
        %391 = vmatpush1.msra.mxu0 %v258
        %392 = vmatprep.subr.mxu0 0.0
        %393 = vmatpush1.msra.mxu0 %v257
        %394 = vmatprep.subr.mxu0 0.0
        %395 = vmatpush1.msra.mxu0 %v256
        %396 = vmatprep.subr.mxu0 0.0
        %397 = vmatpush2.msra.mxu0 0.0
        %398 = vmatprep.subr.mxu0 0.0
        %399 = vmatpush2.msra.mxu0 0.0
        %400 = vmatprep.subr.mxu0 0.0
        %401 = vmatpush2.msra.mxu0 0.0
        %402 = vmatprep.subr.mxu0 0.0
        %403 = vmatpush2.msra.mxu0 0.0
        %404 = vmatprep.subr.mxu0 0.0
        %405 = vmatpush2.msra.mxu0 0.0
        %406 = vmatprep.subr.mxu0 0.0
        %407 = vmatpush2.msra.mxu0 0.0
        %408 = vmatprep.subr.mxu0 0.0
        %409 = vmatpush2.msra.mxu0 0.0
        %410 = vmatprep.subr.mxu0 0.0
        %411 = vmatpush2.msra.mxu0 0.0
        %412 = vmatprep.subr.mxu0 0.0
        %413 = vmatpush2.msra.mxu0 0.0
        %414 = vmatprep.subr.mxu0 0.0
        %415 = vmatpush2.msra.mxu0 0.0
        %416 = vmatprep.subr.mxu0 0.0
        %417 = vmatpush2.msra.mxu0 0.0
        %418 = vmatprep.subr.mxu0 0.0
        %419 = vmatpush2.msra.mxu0 0.0
        %420 = vmatprep.subr.mxu0 0.0
        %421 = vmatpush2.msra.mxu0 0.0
        %422 = vmatprep.subr.mxu0 0.0
        %423 = vmatpush2.msra.mxu0 0.0
        %424 = vmatprep.subr.mxu0 0.0
        %425 = vmatpush2.msra.mxu0 0.0
        %426 = vmatprep.subr.mxu0 0.0
        %427 = vmatpush2.msra.mxu0 0.0
        %428 = vmatprep.mubr.f32.mxu0 0.0
        %429 = vmatmul.mubr.f32.gmra.mxu0 %v269
        %v430 = vpop.f32.mrf.mxu0
        %v431 = vadd.f32 %v265, %v430
        %v432 = vpop.f32.mrf.mxu0
        %433 = vmatprep.mubr.f32.mxu0 0.0
        %434 = vmatmul.mubr.f32.gmra.mxu0 %v272
        %v435 = vpop.f32.mrf.mxu0
        %v436 = vadd.f32 %v265, %v435
        %v437 = vpop.f32.mrf.mxu0
        %438 = vmatprep.mubr.f32.mxu0 0.0
        %439 = vmatmul.mubr.f32.gmra.mxu0 %v275
        %v440 = vpop.f32.mrf.mxu0
        %v441 = vadd.f32 %v265, %v440
        %v442 = vpop.f32.mrf.mxu0
        %443 = vmatprep.mubr.f32.mxu0 0.0
        %444 = vmatmul.mubr.f32.gmra.mxu0 %v278
        %v445 = vpop.f32.mrf.mxu0
        %v446 = vadd.f32 %v265, %v445
        %v447 = vpop.f32.mrf.mxu0
        %448 = vmatprep.mubr.f32.mxu0 0.0
        %449 = vmatmul.mubr.f32.gmra.mxu0 %v281
        %v450 = vpop.f32.mrf.mxu0
        %v451 = vadd.f32 %v265, %v450
        %v452 = vpop.f32.mrf.mxu0
        %453 = vmatprep.mubr.f32.mxu0 0.0
        %454 = vmatmul.mubr.f32.gmra.mxu0 %v284
        %v455 = vpop.f32.mrf.mxu0
        %v456 = vadd.f32 %v265, %v455
        %v457 = vpop.f32.mrf.mxu0
        %458 = vmatprep.mubr.f32.mxu0 0.0
        %459 = vmatmul.mubr.f32.gmra.mxu0 %v287
        %v460 = vpop.f32.mrf.mxu0
        %v461 = vadd.f32 %v265, %v460
        %v462 = vpop.f32.mrf.mxu0
        %463 = vmatprep.mubr.f32.mxu0 0.0
        %464 = vmatmul.mubr.f32.gmra.mxu0 %v290
        %v465 = vpop.f32.mrf.mxu0
        %v466 = vadd.f32 %v265, %v465
        %v467 = vpop.f32.mrf.mxu0
        %468 = vmatprep.mubr.f32.mxu0 0.0
        %469 = vmatmul.mubr.f32.gmra.mxu0 %v293
        %v470 = vpop.f32.mrf.mxu0
        %v471 = vadd.f32 %v265, %v470
        %v472 = vpop.f32.mrf.mxu0
        %473 = vmatprep.mubr.f32.mxu0 0.0
        %474 = vmatmul.mubr.f32.gmra.mxu0 %v296
        %v475 = vpop.f32.mrf.mxu0
        %v476 = vadd.f32 %v265, %v475
        %v477 = vpop.f32.mrf.mxu0
        %478 = vmatprep.mubr.f32.mxu0 0.0
        %479 = vmatmul.mubr.f32.gmra.mxu0 %v299
        %v480 = vpop.f32.mrf.mxu0
        %v481 = vadd.f32 %v265, %v480
        %v482 = vpop.f32.mrf.mxu0
        %483 = vmatprep.mubr.f32.mxu0 0.0
        %484 = vmatmul.mubr.f32.gmra.mxu0 %v302
        %v485 = vpop.f32.mrf.mxu0
        %v486 = vadd.f32 %v265, %v485
        %v487 = vpop.f32.mrf.mxu0
        %488 = vmatprep.mubr.f32.mxu0 0.0
        %489 = vmatmul.mubr.f32.gmra.mxu0 %v305
        %v490 = vpop.f32.mrf.mxu0
        %v491 = vadd.f32 %v265, %v490
        %v492 = vpop.f32.mrf.mxu0
        %493 = vmatprep.mubr.f32.mxu0 0.0
        %494 = vmatmul.mubr.f32.gmra.mxu0 %v308
        %v495 = vpop.f32.mrf.mxu0
        %v496 = vadd.f32 %v265, %v495
        %v497 = vpop.f32.mrf.mxu0
        %498 = vmatprep.mubr.f32.mxu0 0.0
        %499 = vmatmul.mubr.f32.gmra.mxu0 %v311
        %v500 = vpop.f32.mrf.mxu0
        %v501 = vadd.f32 %v265, %v500
        %v502 = vpop.f32.mrf.mxu0
        %503 = vmatprep.mubr.f32.mxu0 0.0
        %504 = vmatmul.mubr.f32.gmra.mxu0 %v314
        %v505 = vpop.f32.mrf.mxu0
        %v506 = vadd.f32 %v265, %v505
        %v507 = vpop.f32.mrf.mxu0
        %508 = vmatprep.mubr.f32.mxu0 0.0
        %509 = vmatmul.mubr.f32.gmra.mxu0 %v317
        %v510 = vpop.f32.mrf.mxu0
        %v511 = vadd.f32 %v265, %v510
        %v512 = vpop.f32.mrf.mxu0
        %513 = vmatprep.mubr.f32.mxu0 0.0
        %514 = vmatmul.mubr.f32.gmra.mxu0 %v320
        %v515 = vpop.f32.mrf.mxu0
        %v516 = vadd.f32 %v265, %v515
        %v517 = vpop.f32.mrf.mxu0
        %518 = vmatprep.mubr.f32.mxu0 0.0
        %519 = vmatmul.mubr.f32.gmra.mxu0 %v323
        %v520 = vpop.f32.mrf.mxu0
        %v521 = vadd.f32 %v265, %v520
        %v522 = vpop.f32.mrf.mxu0
        %523 = vmatprep.mubr.f32.mxu0 0.0
        %524 = vmatmul.mubr.f32.gmra.mxu0 %v326
        %v525 = vpop.f32.mrf.mxu0
        %v526 = vadd.f32 %v265, %v525
        %v527 = vpop.f32.mrf.mxu0
        %528 = vmatprep.mubr.f32.mxu0 0.0
        %529 = vmatmul.mubr.f32.gmra.mxu0 %v329
        %v530 = vpop.f32.mrf.mxu0
        %v531 = vadd.f32 %v265, %v530
        %v532 = vpop.f32.mrf.mxu0
        %533 = vmatprep.mubr.f32.mxu0 0.0
        %534 = vmatmul.mubr.f32.gmra.mxu0 %v332
        %v535 = vpop.f32.mrf.mxu0
        %v536 = vadd.f32 %v265, %v535
        %v537 = vpop.f32.mrf.mxu0
        %538 = vmatprep.mubr.f32.mxu0 0.0
        %539 = vmatmul.mubr.f32.gmra.mxu0 %v335
        %v540 = vpop.f32.mrf.mxu0
        %v541 = vadd.f32 %v265, %v540
        %v542 = vpop.f32.mrf.mxu0
        %543 = vmatprep.mubr.f32.mxu0 0.0
        %544 = vmatmul.mubr.f32.gmra.mxu0 %v338
        %v545 = vpop.f32.mrf.mxu0
        %v546 = vadd.f32 %v265, %v545
        %v547 = vpop.f32.mrf.mxu0
        %548 = vmatprep.mubr.f32.mxu0 0.0
        %549 = vmatmul.mubr.f32.gmra.mxu0 %v341
        %v550 = vpop.f32.mrf.mxu0
        %v551 = vadd.f32 %v265, %v550
        %v552 = vpop.f32.mrf.mxu0
        %553 = vmatprep.mubr.f32.mxu0 0.0
        %554 = vmatmul.mubr.f32.gmra.mxu0 %v344
        %v555 = vpop.f32.mrf.mxu0
        %v556 = vadd.f32 %v265, %v555
        %v557 = vpop.f32.mrf.mxu0
        %558 = vmatprep.mubr.f32.mxu0 0.0
        %559 = vmatmul.mubr.f32.gmra.mxu0 %v347
        %v560 = vpop.f32.mrf.mxu0
        %v561 = vadd.f32 %v265, %v560
        %v562 = vpop.f32.mrf.mxu0
        %563 = vmatprep.mubr.f32.mxu0 0.0
        %564 = vmatmul.mubr.f32.gmra.mxu0 %v350
        %v565 = vpop.f32.mrf.mxu0
        %v566 = vadd.f32 %v265, %v565
        %v567 = vpop.f32.mrf.mxu0
        %568 = vmatprep.mubr.f32.mxu0 0.0
        %569 = vmatmul.mubr.f32.gmra.mxu0 %v353
        %v570 = vpop.f32.mrf.mxu0
        %v571 = vadd.f32 %v265, %v570
        %v572 = vpop.f32.mrf.mxu0
        %573 = vmatprep.mubr.f32.mxu0 0.0
        %574 = vmatmul.mubr.f32.gmra.mxu0 %v356
        %v575 = vpop.f32.mrf.mxu0
        %v576 = vadd.f32 %v265, %v575
        %v577 = vpop.f32.mrf.mxu0
        %578 = vmatprep.mubr.f32.mxu0 0.0
        %579 = vmatmul.mubr.f32.gmra.mxu0 %v359
        %v580 = vpop.f32.mrf.mxu0
        %v581 = vadd.f32 %v265, %v580
        %v582 = vpop.f32.mrf.mxu0
        %583 = vmatprep.mubr.f32.mxu0 0.0
        %584 = vmatmul.mubr.f32.gmra.mxu0 %v362
        %v585 = vpop.f32.mrf.mxu0
        %v586 = vadd.f32 %v265, %v585
        %v587 = vpop.f32.mrf.mxu0
        %588 = vdwg.mxu0
        %v589 = vmax.f32 %v431, 0.0
        %v590 = vmax.f32 %v436, 0.0
        %v591 = vmax.f32 %v441, 0.0
        %v592 = vmax.f32 %v446, 0.0
        %v593 = vmax.f32 %v451, 0.0
        %v594 = vmax.f32 %v456, 0.0
        %v595 = vmax.f32 %v461, 0.0
        %v596 = vmax.f32 %v466, 0.0
        %v597 = vmax.f32 %v471, 0.0
        %v598 = vmax.f32 %v476, 0.0
        %v599 = vmax.f32 %v481, 0.0
        %v600 = vmax.f32 %v486, 0.0
        %v601 = vmax.f32 %v491, 0.0
        %v602 = vmax.f32 %v496, 0.0
        %v603 = vmax.f32 %v501, 0.0
        %v604 = vmax.f32 %v506, 0.0
        %v605 = vmax.f32 %v511, 0.0
        %v606 = vmax.f32 %v516, 0.0
        %v607 = vmax.f32 %v521, 0.0
        %v608 = vmax.f32 %v526, 0.0
        %v609 = vmax.f32 %v531, 0.0
        %v610 = vmax.f32 %v536, 0.0
        %v611 = vmax.f32 %v541, 0.0
        %v612 = vmax.f32 %v546, 0.0
        %v613 = vmax.f32 %v551, 0.0
        %v614 = vmax.f32 %v556, 0.0
        %v615 = vmax.f32 %v561, 0.0
        %v616 = vmax.f32 %v566, 0.0
        %v617 = vmax.f32 %v571, 0.0
        %v618 = vmax.f32 %v576, 0.0
        %v619 = vmax.f32 %v581, 0.0
        %v620 = vmax.f32 %v586, 0.0
        %vm621 = vcmask 523264
        %v622 = vsel %vm621, %v589, 0.0
        %v623 = vsel %vm621, %v590, 0.0
        %v624 = vadd.f32 %v622, %v623
        %v625 = vsel %vm621, %v591, 0.0
        %v626 = vadd.f32 %v624, %v625
        %v627 = vsel %vm621, %v592, 0.0
        %v628 = vadd.f32 %v626, %v627
        %v629 = vsel %vm621, %v593, 0.0
        %v630 = vadd.f32 %v628, %v629
        %v631 = vsel %vm621, %v594, 0.0
        %v632 = vadd.f32 %v630, %v631
        %v633 = vsel %vm621, %v595, 0.0
        %v634 = vadd.f32 %v632, %v633
        %v635 = vsel %vm621, %v596, 0.0
        %v636 = vadd.f32 %v634, %v635
        %v637 = vsel %vm621, %v597, 0.0
        %v638 = vadd.f32 %v636, %v637
        %v639 = vsel %vm621, %v598, 0.0
        %v640 = vadd.f32 %v638, %v639
        %v641 = vsel %vm621, %v599, 0.0
        %v642 = vadd.f32 %v640, %v641
        %v643 = vsel %vm621, %v600, 0.0
        %v644 = vadd.f32 %v642, %v643
        %v645 = vsel %vm621, %v601, 0.0
        %v646 = vadd.f32 %v644, %v645
        %v647 = vsel %vm621, %v602, 0.0
        %v648 = vadd.f32 %v646, %v647
        %v649 = vsel %vm621, %v603, 0.0
        %v650 = vadd.f32 %v648, %v649
        %v651 = vsel %vm621, %v604, 0.0
        %v652 = vadd.f32 %v650, %v651
        %v653 = vsel %vm621, %v605, 0.0
        %v654 = vadd.f32 %v652, %v653
        %v655 = vsel %vm621, %v606, 0.0
        %v656 = vadd.f32 %v654, %v655
        %v657 = vsel %vm621, %v607, 0.0
        %v658 = vadd.f32 %v656, %v657
        %v659 = vsel %vm621, %v608, 0.0
        %v660 = vadd.f32 %v658, %v659
        %v661 = vsel %vm621, %v609, 0.0
        %v662 = vadd.f32 %v660, %v661
        %v663 = vsel %vm621, %v610, 0.0
        %v664 = vadd.f32 %v662, %v663
        %v665 = vsel %vm621, %v611, 0.0
        %v666 = vadd.f32 %v664, %v665
        %v667 = vsel %vm621, %v612, 0.0
        %v668 = vadd.f32 %v666, %v667
        %v669 = vsel %vm621, %v613, 0.0
        %v670 = vadd.f32 %v668, %v669
        %v671 = vsel %vm621, %v614, 0.0
        %v672 = vadd.f32 %v670, %v671
        %v673 = vsel %vm621, %v615, 0.0
        %v674 = vadd.f32 %v672, %v673
        %v675 = vsel %vm621, %v616, 0.0
        %v676 = vadd.f32 %v674, %v675
        %v677 = vsel %vm621, %v617, 0.0
        %v678 = vadd.f32 %v676, %v677
        %v679 = vsel %vm621, %v618, 0.0
        %v680 = vadd.f32 %v678, %v679
        %v681 = vsel %vm621, %v619, 0.0
        %v682 = vadd.f32 %v680, %v681
        %v683 = vsel %vm621, %v620, 0.0
        %v684 = vadd.f32 %v682, %v683
        %v685 = vrot.slane %v684, 4
        %v686 = vadd.f32 %v684, %v685
        %v687 = vrot.slane %v686, 2
        %v688 = vadd.f32 %v686, %v687
        %v689 = vrot.slane %v688, 1
        %v690 = vadd.f32 %v688, %v689
        %v691 = vld [vmem:[%s3] sm:$0xff]
        %v692 = vld [vmem:[%s3 + $0x8] sm:$0xff]
        %v693 = vld [vmem:[%s3 + $0x10] sm:$0xff]
        %v694 = vld [vmem:[%s3 + $0x18] sm:$0xff]
        %v695 = vld [vmem:[%s3 + $0x20] sm:$0xff]
        %v696 = vld [vmem:[%s3 + $0x28] sm:$0xff]
        %v697 = vld [vmem:[%s3 + $0x30] sm:$0xff]
        %v698 = vld [vmem:[%s3 + $0x38] sm:$0xff]
        %v699 = vld [vmem:[%s4] sm:$0x1]
        %v701 = vsel %vm621, %v690, 0
        %703 = vmatprep.subr.mxu0 0.0
        %704 = vmatpush1.msra.mxu0 0.0
        %705 = vmatprep.subr.mxu0 0.0
        %706 = vmatpush1.msra.mxu0 0.0
        %707 = vmatprep.subr.mxu0 0.0
        %708 = vmatpush1.msra.mxu0 0.0
        %709 = vmatprep.subr.mxu0 0.0
        %710 = vmatpush1.msra.mxu0 0.0
        %711 = vmatprep.subr.mxu0 0.0
        %712 = vmatpush1.msra.mxu0 0.0
        %713 = vmatprep.subr.mxu0 0.0
        %714 = vmatpush1.msra.mxu0 0.0
        %715 = vmatprep.subr.mxu0 0.0
        %716 = vmatpush1.msra.mxu0 0.0
        %717 = vmatprep.subr.mxu0 0.0
        %718 = vmatpush1.msra.mxu0 0.0
        %719 = vmatprep.subr.mxu0 0.0
        %720 = vmatpush1.msra.mxu0 %v698
        %721 = vmatprep.subr.mxu0 0.0
        %722 = vmatpush1.msra.mxu0 %v697
        %723 = vmatprep.subr.mxu0 0.0
        %724 = vmatpush1.msra.mxu0 %v696
        %725 = vmatprep.subr.mxu0 0.0
        %726 = vmatpush1.msra.mxu0 %v695
        %727 = vmatprep.subr.mxu0 0.0
        %728 = vmatpush1.msra.mxu0 %v694
        %729 = vmatprep.subr.mxu0 0.0
        %730 = vmatpush1.msra.mxu0 %v693
        %731 = vmatprep.subr.mxu0 0.0
        %732 = vmatpush1.msra.mxu0 %v692
        %733 = vmatprep.subr.mxu0 0.0
        %734 = vmatpush1.msra.mxu0 %v691
        %735 = vmatprep.subr.mxu0 0.0
        %736 = vmatpush2.msra.mxu0 0.0
        %737 = vmatprep.subr.mxu0 0.0
        %738 = vmatpush2.msra.mxu0 0.0
        %739 = vmatprep.subr.mxu0 0.0
        %740 = vmatpush2.msra.mxu0 0.0
        %741 = vmatprep.subr.mxu0 0.0
        %742 = vmatpush2.msra.mxu0 0.0
        %743 = vmatprep.subr.mxu0 0.0
        %744 = vmatpush2.msra.mxu0 0.0
        %745 = vmatprep.subr.mxu0 0.0
        %746 = vmatpush2.msra.mxu0 0.0
        %747 = vmatprep.subr.mxu0 0.0
        %748 = vmatpush2.msra.mxu0 0.0
        %749 = vmatprep.subr.mxu0 0.0
        %750 = vmatpush2.msra.mxu0 0.0
        %751 = vmatprep.subr.mxu0 0.0
        %752 = vmatpush2.msra.mxu0 0.0
        %753 = vmatprep.subr.mxu0 0.0
        %754 = vmatpush2.msra.mxu0 0.0
        %755 = vmatprep.subr.mxu0 0.0
        %756 = vmatpush2.msra.mxu0 0.0
        %757 = vmatprep.subr.mxu0 0.0
        %758 = vmatpush2.msra.mxu0 0.0
        %759 = vmatprep.subr.mxu0 0.0
        %760 = vmatpush2.msra.mxu0 0.0
        %761 = vmatprep.subr.mxu0 0.0
        %762 = vmatpush2.msra.mxu0 0.0
        %763 = vmatprep.subr.mxu0 0.0
        %764 = vmatpush2.msra.mxu0 0.0
        %765 = vmatprep.subr.mxu0 0.0
        %766 = vmatpush2.msra.mxu0 0.0
        %767 = vmatprep.mubr.f32.mxu0 0.0
        %768 = vmatmul.mubr.f32.gmra.mxu0 %v701
        %v769 = vpop.f32.mrf.mxu0
        %v770 = vadd.f32 %v699, %v769
        %v771 = vpop.f32.mrf.mxu0
        %772 = vdwg.mxu0
        %773 = vst [vmem:[%s217] sm:$0x1] %v770
        %s774 = sand.u32 %s137, 1
        %s775 = scalar_lea.sflag [#allocation3], %s774
        %s776 = sand.u32 %s137, 1
        %s777 = scalar_lea.vmem [#allocation2], %s776
        // Predicated region
        $region41: #{tpu_custom_call.1} parent=39 // pred_check
          %p778 = pneg %p147
        $region42: #{tpu_custom_call.1} parent=39 // pred_check_branch
          %780 = sbr.rel (%p778) target = $region44
        $region43: #{tpu_custom_call.1} parent=39 // pred_region
          %s782 = ssub.s32 16, 16
          %783 = vsyncadd %s775, %s782
          %s784 = smul.addr %s19, 16
          %s785 = scalar_lea.hbm %s5, %s784
          %s787 = sshll.u32 %s777, 4
          %s788 = int_to_ptr.vmem [resolvable:$true] %s787
          %790 = dma.vmem_to_hbm [thread:$0]  %s788, 16, %s785, %s775
        $region44: #{tpu_custom_call.1} parent=39 // pred_fallthru
          _
      $region40: #{tpu_custom_call.1} parent=5 // pred_fallthru
        _
      %p791 = scmp.le.s32.totalorder 2, %s14
      // Predicated region
      $region45: #{tpu_custom_call.1} parent=5 // pred_check
        %p792 = pneg %p791
      $region46: #{tpu_custom_call.1} parent=5 // pred_check_branch
        %794 = sbr.rel (%p792) target = $region48
      $region47: #{tpu_custom_call.1} parent=5 // pred_region
        %s795 = ssub.s32 %s14, 2
        // Predicated region
        $region49: #{tpu_custom_call.1} parent=47 // pred_check
          %p796 = pneg %p153
        $region50: #{tpu_custom_call.1} parent=47 // pred_check_branch
          %798 = sbr.rel (%p796) target = $region52
        $region51: #{tpu_custom_call.1} parent=47 // pred_region
          %s799 = sand.u32 %s138, 1
          %s800 = scalar_lea.sflag [#allocation3], %s799
          %s801 = sand.u32 %s138, 1
          %s802 = scalar_lea.vmem [#allocation2], %s801
          %803 = dma.done %s800, 16
        $region52: #{tpu_custom_call.1} parent=47 // pred_fallthru
          _
      $region48: #{tpu_custom_call.1} parent=5 // pred_fallthru
        _
    $region6: #{tpu_custom_call.1} parent=1 // loop_footer
      %s18 = sadd.s32 1, %s14
    $region7: #{tpu_custom_call.1} parent=1 // loop_footer_branch
      %13 = sbr.rel target = $region3
    $region8: #{tpu_custom_call.1} parent=1 // loop_exit
      _
    %804 = vsyncpa [#allocation3], 1
    %s805 = scalar_lea.sflag [#allocation3], 1
    %806 = vsyncpa %s805, 1

</llo_original>
